<compile_context>
chip_gen: v7x
topology: tpu7x:2x2x1
jax: 0.10.0
libtpu: 0.0.40
codegen_flags: <defaults>
</compile_context>

<pallas_src>
import functools

import jax
import jax.numpy as jnp
from jax.experimental import pallas as pl
from jax.experimental.pallas import tpu as pltpu


_LANE = 128      # vreg lane width (last dim)
_SUBLANE = 8     # f32 sublane height (second-to-last dim)
_MAX_TM = 512    # row-tile cap (512 ~ 85% of HBM roofline in measured sweeps)
_VMEM_BUDGET = 24 * 1024 * 1024   # tile-sizing budget (headroom under the limit)
_VMEM_LIMIT = 32 * 1024 * 1024    # explicit scoped-VMEM limit; fits v5e/v6e/v7x


def _round_up(x, m):
    return ((x + m - 1) // m) * m


# --------------------------------------------------------------------------
# Pallas kernel: fused 2-layer MLP  (x @ W1 + b1) -> ReLU -> (@ W2 + b2)
# --------------------------------------------------------------------------
def _term_scorer_kernel(x_ref, w1_ref, b1_ref, w2_ref, b2_ref, o_ref, *, n_cls):
    # x_ref : (tm, d_in_p)        row tile of flattened span representations
    # w1_ref: (d_in_p, d_ffnn_p)  resident across the grid (constant index_map)
    # b1_ref: (1, d_ffnn_p)
    # w2_ref: (d_ffnn_p, n_cls_p) lane-dense (padded to 128) -- 2nd matmul runs
    #                             with a full 128-lane N dim in VMEM only
    # b2_ref: (1, n_cls)          unpadded
    # o_ref : (tm, n_cls)         narrow store straight to the real output
    h = jnp.dot(x_ref[...], w1_ref[...], preferred_element_type=jnp.float32)
    h = jnp.maximum(h + b1_ref[...].astype(jnp.float32), 0.0)   # bias + ReLU (VPU)
    out = jnp.dot(h.astype(w2_ref.dtype), w2_ref[...],
                  preferred_element_type=jnp.float32)
    o_ref[...] = (out[:, :n_cls] + b2_ref[...].astype(jnp.float32)).astype(o_ref.dtype)


def _choose_tm(M, d_in_p, d_ffnn_p, n_cls_p, n_cls, itemsize=4,
               vmem_budget_bytes=_VMEM_BUDGET):
    """VMEM-aware row tile.

    Resident weights counted twice (default pipeliner double-buffers even
    constant-index_map inputs); x/out tiles double-buffered; f32 intermediates
    h (tm, d_ffnn_p) and the pre-slice result (tm, n_cls_p) counted once.
    """
    # TODO(synk): pipeline_mode=pl.Buffered(1) on the weight specs would reclaim
    #             one W1 copy for very large d_in; omitted to keep lowering portable.
    weight_bytes = 2 * itemsize * (
        d_in_p * d_ffnn_p + d_ffnn_p + d_ffnn_p * n_cls_p + n_cls)
    per_row = (2 * itemsize * d_in_p        # x tile, double-buffered
               + 2 * 4 * n_cls              # output tile, double-buffered
               + 4 * (d_ffnn_p + n_cls_p))  # f32 intermediates
    avail = max(vmem_budget_bytes - weight_bytes, per_row * _SUBLANE)
    tm = max(_SUBLANE, min(_MAX_TM, (avail // per_row) // _SUBLANE * _SUBLANE))
    # Re-balance so every grid step gets a near-equal row count (keeps both
    # TensorCores busy on v7x).  Small M naturally stays a single step -- we do
    # NOT force a >=2-way split, which is pure per-step overhead on 1-TC chips.
    n_steps = pl.cdiv(M, tm)
    tm = min(tm, _round_up(pl.cdiv(M, n_steps), _SUBLANE))
    return tm


def term_scorer_pallas(x2d, w1_p, b1_p, w2_p, b2, n_cls, *, tm=None,
                       out_dtype=jnp.float32):
    """Fused Linear -> ReLU -> Linear over rows of x2d: (M, d_in_p) -> (M, n_cls).

    Weights arrive pre-padded (hoisted into the module __init__):
      w1_p (d_in_p, d_ffnn_p), b1_p (1, d_ffnn_p), w2_p (d_ffnn_p, n_cls_p),
      b2 (1, n_cls) unpadded.
    x2d's last dim must already equal d_in_p (the caller only pads when
    d_in % 128 != 0).  The row dim is NOT padded: grid = pl.cdiv(M, tm) and the
    tail block's out-of-bounds output writes are dropped by Pallas; each output
    row depends only on its own input row, so garbage tail reads are harmless.
    """
    M, d_in_p = x2d.shape
    assert w1_p.shape[0] == d_in_p
    d_ffnn_p = w1_p.shape[1]
    n_cls_p = w2_p.shape[1]
    itemsize = jnp.dtype(x2d.dtype).itemsize

    if tm is None:
        tm = _choose_tm(M, d_in_p, d_ffnn_p, n_cls_p, n_cls, itemsize=itemsize)
    grid = (pl.cdiv(M, tm),)

    w_itemsize = jnp.dtype(w1_p.dtype).itemsize
    cost = pl.CostEstimate(
        flops=2 * M * (d_in_p * d_ffnn_p + d_ffnn_p * n_cls_p),
        transcendentals=0,
        bytes_accessed=int(M * d_in_p * itemsize + M * n_cls * 4
                           + (w1_p.size + b1_p.size + w2_p.size) * w_itemsize
                           + b2.size * 4),
    )

    kernel = functools.partial(_term_scorer_kernel, n_cls=n_cls)
    return pl.pallas_call(
        kernel,
        out_shape=jax.ShapeDtypeStruct((M, n_cls), out_dtype),
        grid_spec=pltpu.PrefetchScalarGridSpec(
            num_scalar_prefetch=0,
            grid=grid,
            in_specs=[
                pl.BlockSpec((tm, d_in_p), lambda i: (i, 0)),         # x row tile
                pl.BlockSpec((d_in_p, d_ffnn_p), lambda i: (0, 0)),   # W1 (resident)
                pl.BlockSpec((1, d_ffnn_p), lambda i: (0, 0)),        # b1 (resident)
                pl.BlockSpec((d_ffnn_p, n_cls_p), lambda i: (0, 0)),  # W2 (resident)
                pl.BlockSpec((1, n_cls), lambda i: (0, 0)),           # b2 (resident)
            ],
            out_specs=pl.BlockSpec((tm, n_cls), lambda i: (i, 0)),
        ),
        compiler_params=pltpu.CompilerParams(
            dimension_semantics=("parallel",),
            vmem_limit_bytes=_VMEM_LIMIT),
        cost_estimate=cost,
    )(x2d, w1_p, b1_p, w2_p, b2)


# --------------------------------------------------------------------------
# SpanMltriLite wrapper (parameter setup + reshapes in plain JAX)
# --------------------------------------------------------------------------
class SpanMltriLiteJAX:
    def __init__(self, d_hidden=768, max_sentence_length=40, max_span_length=4,
                 num_of_te_class=3, num_of_relation_class=4, k=0.4, *,
                 key, dtype=jnp.float32):
        del num_of_relation_class, k          # unused by the reference forward
        d_in = d_hidden * max_span_length
        d_ffnn = max_sentence_length
        n_cls = num_of_te_class
        k1, k2, k3, k4 = jax.random.split(key, 4)
        # Deterministic synthetic init (uniform, Linear-style scaling).
        s1 = 1.0 / jnp.sqrt(d_in)
        s2 = 1.0 / jnp.sqrt(d_ffnn)
        # Raw (unpadded) parameters -- kept for the pure-JAX reference.
        self.w1 = jax.random.uniform(k1, (d_in, d_ffnn), jnp.float32, -s1, s1)
        self.b1 = jax.random.uniform(k2, (1, d_ffnn), jnp.float32, -s1, s1)
        self.w2 = jax.random.uniform(k3, (d_ffnn, n_cls), jnp.float32, -s2, s2)
        self.b2 = jax.random.uniform(k4, (1, n_cls), jnp.float32, -s2, s2)
        self.n_cls = n_cls
        self.d_in = d_in
        self.dtype = dtype                    # bf16 here halves x/W1 HBM traffic

        # Hoisted, weight-stationary padded copies (built ONCE, not per call).
        # Hidden/class dims are zero-padded to a full 128-lane width so both
        # MXU matmuls are lane-dense; the zero pads keep the math exact
        # (ReLU(0 + 0) = 0, zero W2 rows contribute nothing, padded output
        # columns are never stored).
        self.d_in_p = _round_up(d_in, _LANE)
        d_ffnn_p = _round_up(d_ffnn, _LANE)
        n_cls_p = _round_up(n_cls, _LANE)
        self.w1_p = (jnp.zeros((self.d_in_p, d_ffnn_p), jnp.float32)
                     .at[:d_in, :d_ffnn].set(self.w1).astype(dtype))
        self.b1_p = (jnp.zeros((1, d_ffnn_p), jnp.float32)
                     .at[:, :d_ffnn].set(self.b1).astype(dtype))
        self.w2_p = (jnp.zeros((d_ffnn_p, n_cls_p), jnp.float32)
                     .at[:d_ffnn, :n_cls].set(self.w2).astype(dtype))
        self.b2_f32 = self.b2.astype(jnp.float32)   # unpadded; added in f32

    def __call__(self, x, span_ranges=None):
        # span_ranges is accepted but unused, exactly like the reference forward.
        B, S, d_in = x.shape
        x2d = x.reshape(B * S, d_in).astype(self.dtype)
        # Only pad the feature dim when it is not already a lane multiple; with
        # d_in = d_hidden * max_span_length it usually is, so no extra HBM copy
        # of x is made before the kernel.
        if d_in != self.d_in_p:
            x2d = jnp.pad(x2d, ((0, 0), (0, self.d_in_p - d_in)))
        logits = term_scorer_pallas(x2d, self.w1_p, self.b1_p, self.w2_p,
                                    self.b2_f32, self.n_cls)
        return logits.reshape(B, S, self.n_cls)


def _reference_forward(x, model):
    h = jnp.maximum(x @ model.w1 + model.b1, 0.0)
    return h @ model.w2 + model.b2


if __name__ == "__main__":
    key = jax.random.PRNGKey(0)
    k_param, k_x = jax.random.split(key)

    # Small shapes consistent with the module's constructor:
    #   d_hidden=32, max_span_length=4  -> d_in = 128 (already lane-aligned)
    #   max_sentence_length=8 (TermScorer hidden), num_of_te_class=3
    batch, n_spans, d_hidden, max_span_length = 2, 8, 32, 4
    d_in = d_hidden * max_span_length

    model = SpanMltriLiteJAX(d_hidden=d_hidden, max_sentence_length=8,
                             max_span_length=max_span_length,
                             num_of_te_class=3, key=k_param)

    x = jax.random.normal(k_x, (batch, n_spans, d_in), dtype=jnp.float32)
    span_ranges = jnp.zeros((batch, n_spans, 2), dtype=jnp.int32)  # unused

    out = jax.block_until_ready(model(x, span_ranges))

    ref = _reference_forward(x, model)
    assert out.shape == (batch, n_spans, 3)
    assert jnp.allclose(out, ref, atol=1e-4, rtol=1e-4)

    print("KERNEL_OK")
</pallas_src>

<mosaic_0001>
module attributes {stable_mosaic.version = 11 : i64} {
  func.func @_term_scorer_kernel(%arg0: i32, %arg1: memref<16x128xf32, #tpu.memory_space<vmem>>, %arg2: memref<128x128xf32, #tpu.memory_space<vmem>>, %arg3: memref<1x128xf32, #tpu.memory_space<vmem>>, %arg4: memref<128x128xf32, #tpu.memory_space<vmem>>, %arg5: memref<1x3xf32, #tpu.memory_space<vmem>>, %arg6: memref<16x3xf32, #tpu.memory_space<vmem>>) attributes {dimension_semantics = [#tpu.dimension_semantics<parallel>], iteration_bounds = array<i64: 1>, scalar_prefetch = 0 : i64, scratch_operands = 0 : i64, tpu.core_type = #tpu.core_type<tc>, window_params = [{transform_indices = @transform_0, window_bounds = array<i64: 16, 128>}, {pipeline_mode = #tpu.pipeline_mode<synchronous>, transform_indices = @transform_1, window_bounds = array<i64: 128, 128>}, {pipeline_mode = #tpu.pipeline_mode<synchronous>, transform_indices = @transform_2, window_bounds = array<i64: 1, 128>}, {pipeline_mode = #tpu.pipeline_mode<synchronous>, transform_indices = @transform_3, window_bounds = array<i64: 128, 128>}, {pipeline_mode = #tpu.pipeline_mode<synchronous>, transform_indices = @transform_4, window_bounds = array<i64: 1, 3>}, {transform_indices = @transform_5, window_bounds = array<i64: 16, 3>}]} {
    %c0 = arith.constant 0 : index
    %c0_0 = arith.constant 0 : index
    %0 = vector.load %arg1[%c0, %c0_0] : memref<16x128xf32, #tpu.memory_space<vmem>>, vector<16x128xf32>
    %c0_1 = arith.constant 0 : index
    %c0_2 = arith.constant 0 : index
    %1 = vector.load %arg2[%c0_1, %c0_2] : memref<128x128xf32, #tpu.memory_space<vmem>>, vector<128x128xf32>
    %cst = arith.constant dense<0.000000e+00> : vector<16x128xf32>
    %2 = tpu.matmul %0, %1, %cst {dimension_numbers = #tpu.dot_dimension_numbers<[1], [0], [0], [1], [0, 0, 1, 1], [], []>} : vector<16x128xf32>, vector<128x128xf32>, vector<16x128xf32> -> vector<16x128xf32>
    %c0_3 = arith.constant 0 : index
    %c0_4 = arith.constant 0 : index
    %3 = vector.load %arg3[%c0_3, %c0_4] : memref<1x128xf32, #tpu.memory_space<vmem>>, vector<1x128xf32>
    %4 = vector.broadcast %3 : vector<1x128xf32> to vector<16x128xf32>
    %5 = arith.addf %2, %4 : vector<16x128xf32>
    %cst_5 = arith.constant 0.000000e+00 : f32
    %6 = vector.broadcast %cst_5 : f32 to vector<16x128xf32>
    %7 = arith.maximumf %5, %6 : vector<16x128xf32>
    %c0_6 = arith.constant 0 : index
    %c0_7 = arith.constant 0 : index
    %8 = vector.load %arg4[%c0_6, %c0_7] : memref<128x128xf32, #tpu.memory_space<vmem>>, vector<128x128xf32>
    %cst_8 = arith.constant dense<0.000000e+00> : vector<16x128xf32>
    %9 = tpu.matmul %7, %8, %cst_8 {dimension_numbers = #tpu.dot_dimension_numbers<[1], [0], [0], [1], [0, 0, 1, 1], [], []>} : vector<16x128xf32>, vector<128x128xf32>, vector<16x128xf32> -> vector<16x128xf32>
    %10 = vector.extract_strided_slice %9 {offsets = [0, 0], sizes = [16, 3], strides = [1, 1]} : vector<16x128xf32> to vector<16x3xf32>
    %c0_9 = arith.constant 0 : index
    %c0_10 = arith.constant 0 : index
    %11 = vector.load %arg5[%c0_9, %c0_10] : memref<1x3xf32, #tpu.memory_space<vmem>>, vector<1x3xf32>
    %12 = vector.broadcast %11 : vector<1x3xf32> to vector<16x3xf32>
    %13 = arith.addf %10, %12 : vector<16x3xf32>
    %c0_11 = arith.constant 0 : index
    %c0_12 = arith.constant 0 : index
    %14 = vector.load %arg6[%c0_11, %c0_12] : memref<16x3xf32, #tpu.memory_space<vmem>>, vector<16x3xf32>
    tpu.vector_store %arg6[%c0_11, %c0_12], %13 {strides = array<i32>} : memref<16x3xf32, #tpu.memory_space<vmem>>, vector<16x3xf32>,
    return
  }
  func.func @transform_0(%arg0: i32) -> (i32, i32) {
    %c0_i32 = arith.constant 0 : i32
    %c0_i32_0 = arith.constant 0 : i32
    return %arg0, %c0_i32 : i32, i32
  }
  func.func @transform_1(%arg0: i32) -> (i32, i32) {
    %c0_i32 = arith.constant 0 : i32
    %c0_i32_0 = arith.constant 0 : i32
    %c0_i32_1 = arith.constant 0 : i32
    return %c0_i32, %c0_i32_0 : i32, i32
  }
  func.func @transform_2(%arg0: i32) -> (i32, i32) {
    %c0_i32 = arith.constant 0 : i32
    %c0_i32_0 = arith.constant 0 : i32
    %c0_i32_1 = arith.constant 0 : i32
    return %c0_i32, %c0_i32_0 : i32, i32
  }
  func.func @transform_3(%arg0: i32) -> (i32, i32) {
    %c0_i32 = arith.constant 0 : i32
    %c0_i32_0 = arith.constant 0 : i32
    %c0_i32_1 = arith.constant 0 : i32
    return %c0_i32, %c0_i32_0 : i32, i32
  }
  func.func @transform_4(%arg0: i32) -> (i32, i32) {
    %c0_i32 = arith.constant 0 : i32
    %c0_i32_0 = arith.constant 0 : i32
    %c0_i32_1 = arith.constant 0 : i32
    return %c0_i32, %c0_i32_0 : i32, i32
  }
  func.func @transform_5(%arg0: i32) -> (i32, i32) {
    %c0_i32 = arith.constant 0 : i32
    %c0_i32_0 = arith.constant 0 : i32
    return %arg0, %c0_i32 : i32, i32
  }
}

</mosaic_0001>

<llo_original>
// kernel: tpu_custom_call.1
$region0: #{tpu_custom_call.1}
  #allocation0 [shape = 'u32[]', space=smem, size = 0x4, offset = 0x4, fixed_abs, tag = 'smem constant byte address 0x4 - core index']
  #allocation1 [shape = 'u32[144,128]{1,0:T(1,128)}', space=vmem, size = 0x12000, scoped, tag = 'internal scratch']
  %s0 = inlined_call_operand.hbm [shape: f32[16,128], index: 0, kind: input, shape index: {}]
  %s1 = inlined_call_operand.hbm [shape: f32[128,128], index: 1, kind: input, shape index: {}]
  %s2 = inlined_call_operand.vmem [shape: f32[1,128], index: 2, kind: input, shape index: {}]
  %s3 = inlined_call_operand.hbm [shape: f32[128,128], index: 3, kind: input, shape index: {}]
  %s4 = inlined_call_operand.vmem [shape: f32[1,3], index: 4, kind: input, shape index: {}]
  %s5 = inlined_call_operand.vmem [shape: f32[16,3], index: 5, kind: output, shape index: {}]
  %s6 = sld [smem:[#allocation0]]
  $region42: #{tpu_custom_call.1} parent=0
    _
  %s8 = ssub.s32 1, %s6
  %s9 = scalar_select 0, %s8, %s6
  $region1: #{tpu_custom_call.1} parent=0
    #allocation2 [shape = 'u8[8192]{0}', space=vmem, size = 0x2000, scoped, tag = 'input window, operand 0, single buffered']
    #allocation3 [shape = 's32[1]{0}', space=sflag, size = 0x4, scoped, tag = 'scoped memory for tpu_custom_call.1']
    #allocation4 [shape = 'u8[65536]{0}', space=vmem, size = 0x10000, scoped, tag = 'input window, operand 1, single buffered']
    #allocation5 [shape = 's32[1]{0}', space=sflag, size = 0x4, scoped, tag = 'scoped memory for tpu_custom_call.1']
    #allocation6 [shape = 'u8[65536]{0}', space=vmem, size = 0x10000, scoped, tag = 'input window, operand 3, single buffered']
    %10 = vsyncpa [#allocation3], 0
    %11 = vsyncpa [#allocation5], 0
    // Predicated region
    $region2: #{tpu_custom_call.1} parent=1 // pred_check
      _
    $region3: #{tpu_custom_call.1} parent=1 // pred_check_branch
      %13 = sbr.rel (0) target = $region5
    $region4: #{tpu_custom_call.1} parent=1 // pred_region
      %s15 = ssub.s32 256, 256
      %16 = vsyncadd [#allocation3], %s15
      %s17 = sshll.u32 [#allocation2], 4
      %s18 = int_to_ptr.vmem [resolvable:$true] %s17
      %23 = dma.hbm_to_vmem [thread:$0]  %s0, 256, %s18, [#allocation3], 128, 128, 8
    $region5: #{tpu_custom_call.1} parent=1 // pred_fallthru
      _
    // Predicated region
    $region6: #{tpu_custom_call.1} parent=1 // pred_check
      _
    $region7: #{tpu_custom_call.1} parent=1 // pred_check_branch
      %25 = sbr.rel (0) target = $region9
    $region8: #{tpu_custom_call.1} parent=1 // pred_region
      %s27 = ssub.s32 2048, 2048
      %28 = vsyncadd [#allocation5], %s27
      %s29 = sshll.u32 [#allocation4], 4
      %s30 = int_to_ptr.vmem [resolvable:$true] %s29
      %35 = dma.hbm_to_vmem [thread:$0]  %s1, 2048, %s30, [#allocation5], 128, 128, 8
    $region9: #{tpu_custom_call.1} parent=1 // pred_fallthru
      _
    // Predicated region
    $region10: #{tpu_custom_call.1} parent=1 // pred_check
      _
    $region11: #{tpu_custom_call.1} parent=1 // pred_check_branch
      %37 = sbr.rel (0) target = $region13
    $region12: #{tpu_custom_call.1} parent=1 // pred_region
      _
    $region13: #{tpu_custom_call.1} parent=1 // pred_fallthru
      _
    // Predicated region
    $region14: #{tpu_custom_call.1} parent=1 // pred_check
      _
    $region15: #{tpu_custom_call.1} parent=1 // pred_check_branch
      %39 = sbr.rel (0) target = $region17
    $region16: #{tpu_custom_call.1} parent=1 // pred_region
      %s41 = ssub.s32 2048, 2048
      %42 = vsyncadd [#allocation5], %s41
      %s43 = sshll.u32 [#allocation6], 4
      %s44 = int_to_ptr.vmem [resolvable:$true] %s43
      %49 = dma.hbm_to_vmem [thread:$0]  %s3, 2048, %s44, [#allocation5], 128, 128, 8
    $region17: #{tpu_custom_call.1} parent=1 // pred_fallthru
      _
    // Predicated region
    $region18: #{tpu_custom_call.1} parent=1 // pred_check
      _
    $region19: #{tpu_custom_call.1} parent=1 // pred_check_branch
      %51 = sbr.rel (0) target = $region21
    $region20: #{tpu_custom_call.1} parent=1 // pred_region
      _
    $region21: #{tpu_custom_call.1} parent=1 // pred_fallthru
      _
    // Predicated region
    $region22: #{tpu_custom_call.1} parent=1 // pred_check
      _
    $region23: #{tpu_custom_call.1} parent=1 // pred_check_branch
      %53 = sbr.rel (0) target = $region25
    $region24: #{tpu_custom_call.1} parent=1 // pred_region
      %54 = dma.done [#allocation3], 256
    $region25: #{tpu_custom_call.1} parent=1 // pred_fallthru
      _
    // Predicated region
    $region26: #{tpu_custom_call.1} parent=1 // pred_check
      _
    $region27: #{tpu_custom_call.1} parent=1 // pred_check_branch
      %56 = sbr.rel (0) target = $region29
    $region28: #{tpu_custom_call.1} parent=1 // pred_region
      %57 = dma.done [#allocation5], 2048
    $region29: #{tpu_custom_call.1} parent=1 // pred_fallthru
      _
    // Predicated region
    $region30: #{tpu_custom_call.1} parent=1 // pred_check
      _
    $region31: #{tpu_custom_call.1} parent=1 // pred_check_branch
      %59 = sbr.rel (0) target = $region33
    $region32: #{tpu_custom_call.1} parent=1 // pred_region
      %60 = dma.done [#allocation5], 2048
    $region33: #{tpu_custom_call.1} parent=1 // pred_fallthru
      _
    %v61 = vld [vmem:[#allocation2] sm:$0xff]
    %v62 = vld [vmem:[#allocation2 + $0x8] sm:$0xff]
    %v63 = vld [vmem:[#allocation4] sm:$0xff]
    %v64 = vld [vmem:[#allocation4 + $0x8] sm:$0xff]
    %v65 = vld [vmem:[#allocation4 + $0x10] sm:$0xff]
    %v66 = vld [vmem:[#allocation4 + $0x18] sm:$0xff]
    %v67 = vld [vmem:[#allocation4 + $0x20] sm:$0xff]
    %v68 = vld [vmem:[#allocation4 + $0x28] sm:$0xff]
    %v69 = vld [vmem:[#allocation4 + $0x30] sm:$0xff]
    %v70 = vld [vmem:[#allocation4 + $0x38] sm:$0xff]
    %v71 = vld [vmem:[#allocation4 + $0x40] sm:$0xff]
    %v72 = vld [vmem:[#allocation4 + $0x48] sm:$0xff]
    %v73 = vld [vmem:[#allocation4 + $0x50] sm:$0xff]
    %v74 = vld [vmem:[#allocation4 + $0x58] sm:$0xff]
    %v75 = vld [vmem:[#allocation4 + $0x60] sm:$0xff]
    %v76 = vld [vmem:[#allocation4 + $0x68] sm:$0xff]
    %v77 = vld [vmem:[#allocation4 + $0x70] sm:$0xff]
    %v78 = vld [vmem:[#allocation4 + $0x78] sm:$0xff]
    %v79 = vld [vmem:[%s2] sm:$0x1]
    %v81 = vlaneseq
    %v82 = vshrl.u32 %v81, 7
    %v83 = vsub.s32 0, %v82
    %v84 = vrot.slane %v79, %v83
    %86 = vmatprep.subr.mxu0 0.0
    %87 = vmatpush1.msra.mxu0 %v63
    %88 = vmatprep.subr.mxu0 0.0
    %89 = vmatpush1.msra.mxu0 %v64
    %90 = vmatprep.subr.mxu0 0.0
    %91 = vmatpush1.msra.mxu0 %v65
    %92 = vmatprep.subr.mxu0 0.0
    %93 = vmatpush1.msra.mxu0 %v66
    %94 = vmatprep.subr.mxu0 0.0
    %95 = vmatpush1.msra.mxu0 %v67
    %96 = vmatprep.subr.mxu0 0.0
    %97 = vmatpush1.msra.mxu0 %v68
    %98 = vmatprep.subr.mxu0 0.0
    %99 = vmatpush1.msra.mxu0 %v69
    %100 = vmatprep.subr.mxu0 0.0
    %101 = vmatpush1.msra.mxu0 %v70
    %102 = vmatprep.subr.mxu0 0.0
    %103 = vmatpush1.msra.mxu0 %v71
    %104 = vmatprep.subr.mxu0 0.0
    %105 = vmatpush1.msra.mxu0 %v72
    %106 = vmatprep.subr.mxu0 0.0
    %107 = vmatpush1.msra.mxu0 %v73
    %108 = vmatprep.subr.mxu0 0.0
    %109 = vmatpush1.msra.mxu0 %v74
    %110 = vmatprep.subr.mxu0 0.0
    %111 = vmatpush1.msra.mxu0 %v75
    %112 = vmatprep.subr.mxu0 0.0
    %113 = vmatpush1.msra.mxu0 %v76
    %114 = vmatprep.subr.mxu0 0.0
    %115 = vmatpush1.msra.mxu0 %v77
    %116 = vmatprep.subr.mxu0 0.0
    %117 = vmatpush1.msra.mxu0 %v78
    %118 = vmatprep.subr.mxu0 0.0
    %119 = vmatpush1.msra.mxu0 0.0
    %120 = vmatprep.subr.mxu0 0.0
    %121 = vmatpush1.msra.mxu0 0.0
    %122 = vmatprep.subr.mxu0 0.0
    %123 = vmatpush1.msra.mxu0 0.0
    %124 = vmatprep.subr.mxu0 0.0
    %125 = vmatpush1.msra.mxu0 0.0
    %126 = vmatprep.subr.mxu0 0.0
    %127 = vmatpush1.msra.mxu0 0.0
    %128 = vmatprep.subr.mxu0 0.0
    %129 = vmatpush1.msra.mxu0 0.0
    %130 = vmatprep.subr.mxu0 0.0
    %131 = vmatpush1.msra.mxu0 0.0
    %132 = vmatprep.subr.mxu0 0.0
    %133 = vmatpush1.msra.mxu0 0.0
    %134 = vmatprep.subr.mxu0 0.0
    %135 = vmatpush1.msra.mxu0 0.0
    %136 = vmatprep.subr.mxu0 0.0
    %137 = vmatpush1.msra.mxu0 0.0
    %138 = vmatprep.subr.mxu0 0.0
    %139 = vmatpush1.msra.mxu0 0.0
    %140 = vmatprep.subr.mxu0 0.0
    %141 = vmatpush1.msra.mxu0 0.0
    %142 = vmatprep.subr.mxu0 0.0
    %143 = vmatpush1.msra.mxu0 0.0
    %144 = vmatprep.subr.mxu0 0.0
    %145 = vmatpush1.msra.mxu0 0.0
    %146 = vmatprep.subr.mxu0 0.0
    %147 = vmatpush1.msra.mxu0 0.0
    %148 = vmatprep.subr.mxu0 0.0
    %149 = vmatpush1.msra.mxu0 0.0
    %150 = vmatprep.mubr.f32.mxu0 0.0
    %151 = vmatmul.mubr.f32.gmra.mrb[0].mxu0 %v61
    %v152 = vpop.f32.mrb[0].mxu0
    %v153 = vadd.f32 %v84, %v152
    %v154 = vpop.f32.mrb[0].mxu0
    %155 = vmatprep.mubr.f32.mxu0 0.0
    %156 = vmatmul.mubr.f32.gmra.mrb[0].mxu0 %v62
    %v157 = vpop.f32.mrb[0].mxu0
    %v158 = vadd.f32 %v84, %v157
    %v159 = vpop.f32.mrb[0].mxu0
    %160 = vdwg.mxu0
    %v161 = vmax.f32 %v153, 0.0
    %v162 = vmax.f32 %v158, 0.0
    %v163 = vld [vmem:[#allocation6] sm:$0xff]
    %v164 = vld [vmem:[#allocation6 + $0x8] sm:$0xff]
    %v165 = vld [vmem:[#allocation6 + $0x10] sm:$0xff]
    %v166 = vld [vmem:[#allocation6 + $0x18] sm:$0xff]
    %v167 = vld [vmem:[#allocation6 + $0x20] sm:$0xff]
    %v168 = vld [vmem:[#allocation6 + $0x28] sm:$0xff]
    %v169 = vld [vmem:[#allocation6 + $0x30] sm:$0xff]
    %v170 = vld [vmem:[#allocation6 + $0x38] sm:$0xff]
    %v171 = vld [vmem:[#allocation6 + $0x40] sm:$0xff]
    %v172 = vld [vmem:[#allocation6 + $0x48] sm:$0xff]
    %v173 = vld [vmem:[#allocation6 + $0x50] sm:$0xff]
    %v174 = vld [vmem:[#allocation6 + $0x58] sm:$0xff]
    %v175 = vld [vmem:[#allocation6 + $0x60] sm:$0xff]
    %v176 = vld [vmem:[#allocation6 + $0x68] sm:$0xff]
    %v177 = vld [vmem:[#allocation6 + $0x70] sm:$0xff]
    %v178 = vld [vmem:[#allocation6 + $0x78] sm:$0xff]
    %179 = vmatprep.subr.mxu0 0.0
    %180 = vmatpush1.msra.mxu0 %v163
    %181 = vmatprep.subr.mxu0 0.0
    %182 = vmatpush1.msra.mxu0 %v164
    %183 = vmatprep.subr.mxu0 0.0
    %184 = vmatpush1.msra.mxu0 %v165
    %185 = vmatprep.subr.mxu0 0.0
    %186 = vmatpush1.msra.mxu0 %v166
    %187 = vmatprep.subr.mxu0 0.0
    %188 = vmatpush1.msra.mxu0 %v167
    %189 = vmatprep.subr.mxu0 0.0
    %190 = vmatpush1.msra.mxu0 %v168
    %191 = vmatprep.subr.mxu0 0.0
    %192 = vmatpush1.msra.mxu0 %v169
    %193 = vmatprep.subr.mxu0 0.0
    %194 = vmatpush1.msra.mxu0 %v170
    %195 = vmatprep.subr.mxu0 0.0
    %196 = vmatpush1.msra.mxu0 %v171
    %197 = vmatprep.subr.mxu0 0.0
    %198 = vmatpush1.msra.mxu0 %v172
    %199 = vmatprep.subr.mxu0 0.0
    %200 = vmatpush1.msra.mxu0 %v173
    %201 = vmatprep.subr.mxu0 0.0
    %202 = vmatpush1.msra.mxu0 %v174
    %203 = vmatprep.subr.mxu0 0.0
    %204 = vmatpush1.msra.mxu0 %v175
    %205 = vmatprep.subr.mxu0 0.0
    %206 = vmatpush1.msra.mxu0 %v176
    %207 = vmatprep.subr.mxu0 0.0
    %208 = vmatpush1.msra.mxu0 %v177
    %209 = vmatprep.subr.mxu0 0.0
    %210 = vmatpush1.msra.mxu0 %v178
    %211 = vmatprep.subr.mxu0 0.0
    %212 = vmatpush1.msra.mxu0 0.0
    %213 = vmatprep.subr.mxu0 0.0
    %214 = vmatpush1.msra.mxu0 0.0
    %215 = vmatprep.subr.mxu0 0.0
    %216 = vmatpush1.msra.mxu0 0.0
    %217 = vmatprep.subr.mxu0 0.0
    %218 = vmatpush1.msra.mxu0 0.0
    %219 = vmatprep.subr.mxu0 0.0
    %220 = vmatpush1.msra.mxu0 0.0
    %221 = vmatprep.subr.mxu0 0.0
    %222 = vmatpush1.msra.mxu0 0.0
    %223 = vmatprep.subr.mxu0 0.0
    %224 = vmatpush1.msra.mxu0 0.0
    %225 = vmatprep.subr.mxu0 0.0
    %226 = vmatpush1.msra.mxu0 0.0
    %227 = vmatprep.subr.mxu0 0.0
    %228 = vmatpush1.msra.mxu0 0.0
    %229 = vmatprep.subr.mxu0 0.0
    %230 = vmatpush1.msra.mxu0 0.0
    %231 = vmatprep.subr.mxu0 0.0
    %232 = vmatpush1.msra.mxu0 0.0
    %233 = vmatprep.subr.mxu0 0.0
    %234 = vmatpush1.msra.mxu0 0.0
    %235 = vmatprep.subr.mxu0 0.0
    %236 = vmatpush1.msra.mxu0 0.0
    %237 = vmatprep.subr.mxu0 0.0
    %238 = vmatpush1.msra.mxu0 0.0
    %239 = vmatprep.subr.mxu0 0.0
    %240 = vmatpush1.msra.mxu0 0.0
    %241 = vmatprep.subr.mxu0 0.0
    %242 = vmatpush1.msra.mxu0 0.0
    %243 = vmatprep.mubr.f32.mxu0 0.0
    %244 = vmatmul.mubr.f32.gmra.mrb[0].mxu0 %v161
    %v245 = vpop.f32.mrb[0].mxu0
    %v246 = vadd.f32 0.0, %v245
    %v247 = vpop.f32.mrb[0].mxu0
    %248 = vmatprep.mubr.f32.mxu0 0.0
    %249 = vmatmul.mubr.f32.gmra.mrb[0].mxu0 %v162
    %v250 = vpop.f32.mrb[0].mxu0
    %v251 = vadd.f32 0.0, %v250
    %v252 = vpop.f32.mrb[0].mxu0
    %253 = vdwg.mxu0
    %v254 = vld [vmem:[%s4] sm:$0x1]
    %v256 = vlaneseq
    %v257 = vshrl.u32 %v256, 7
    %v258 = vsub.s32 0, %v257
    %v259 = vrot.slane %v254, %v258
    %v261 = vadd.f32 %v246, %v259
    %v262 = vadd.f32 %v251, %v259
    %vm263 = vcmask 23552
    %264 = vst.msk [vmem:[%s5] sm:$0xff] %vm263, %v261
    %265 = vst.msk [vmem:[%s5 + $0x8] sm:$0xff] %vm263, %v262
    // Predicated region
    $region34: #{tpu_custom_call.1} parent=1 // pred_check
      _
    $region35: #{tpu_custom_call.1} parent=1 // pred_check_branch
      %267 = sbr.rel (0) target = $region37
    $region36: #{tpu_custom_call.1} parent=1 // pred_region
      _
    $region37: #{tpu_custom_call.1} parent=1 // pred_fallthru
      _
    // Predicated region
    $region38: #{tpu_custom_call.1} parent=1 // pred_check
      _
    $region39: #{tpu_custom_call.1} parent=1 // pred_check_branch
      %269 = sbr.rel (0) target = $region41
    $region40: #{tpu_custom_call.1} parent=1 // pred_region
      _
    $region41: #{tpu_custom_call.1} parent=1 // pred_fallthru
      _
    %270 = vsyncpa [#allocation3], 1
    %271 = vsyncpa [#allocation5], 1

</llo_original>
